<compile_context>
chip_gen: v7x
topology: tpu7x:2x2x1
jax: 0.10.0
libtpu: 0.0.40
codegen_flags: <defaults>
</compile_context>

<pallas_src>
import functools

import jax
import jax.numpy as jnp
from jax.experimental import pallas as pl
from jax.experimental.pallas import tpu as pltpu


def _sigmoid2d_kernel(x_ref, slope_ref, o_ref, *, beta):
    # x_ref:     (TR, TL) block of the flattened feature maps
    # slope_ref: (1,  TL) pre-broadcast slope row (same row block along lanes)
    x = x_ref[...].astype(jnp.float32)
    s = slope_ref[...].astype(jnp.float32)        # (1, TL): sublane broadcast
    y = beta * jax.nn.sigmoid(s * x)
    o_ref[...] = y.astype(o_ref.dtype)


def _target_block_bytes():
    """Generation-aware per-buffer block target."""
    default = 4 * 1024 * 1024                      # good for v5e/v6e roofline
    try:
        info = pltpu.get_tpu_info()
        vmem = getattr(info, "vmem_capacity_bytes", None)
        # v7x exposes 64 MiB VMEM per TensorCore (v5e/v6e: 128 MiB) and has
        # ~3.2 TB/s HBM: bigger blocks amortize per-step overhead, and
        # 8 MiB x 2 buffers x (in + out) = 32 MiB still fits with headroom.
        if vmem is not None and vmem <= 64 * 1024 * 1024:
            return 8 * 1024 * 1024
    except Exception:
        pass
    return default


def _pick_tiles(R, L, itemsize, target_bytes):
    """Row/lane tile sizes bounded by target_bytes per block."""
    # Packed-sublane tile: 8 for 32-bit, 16 for bf16, 32 for int8/fp8.
    sublane = max(8, 32 // max(1, itemsize))
    # Lane tile: full L when affordable, else the largest 128-multiple such
    # that one packed-sublane-high block stays within budget.
    max_tl = max(128, (target_bytes // (sublane * itemsize)) // 128 * 128)
    tl = L if L <= max_tl else max_tl
    # Row tile: fill the remaining budget, rounded to the packed tile.
    tr = target_bytes // (tl * itemsize)
    if tr >= R:
        tr = R
    elif tr >= sublane:
        tr = (tr // sublane) * sublane
    else:
        tr = min(sublane, R)
    # Hard (8,128) rule: tr must be a multiple of 8 or equal the full extent.
    if tr != R and tr % 8 != 0:
        tr = max(8, (tr // 8) * 8)
    return tr, tl


def sigmoid2d(x, slope, beta=1.0):
    """x: (N, C, H, W) with H == slope.shape[0]; slope: (in_features, 1)."""
    N, C, H, W = x.shape
    assert slope.shape == (H, 1), (
        "slope must be (in_features, 1) with in_features == H")

    R, L = N * C, H * W

    # Lane-dense views: (R, L) data, (1, L) pre-broadcast slope row.
    x_flat = x.reshape(R, L)
    slope_row = jnp.broadcast_to(slope, (H, W)).reshape(1, L)

    itemsize = jnp.dtype(x.dtype).itemsize
    target = _target_block_bytes()
    tr, tl = _pick_tiles(R, L, itemsize, target)
    grid = (pl.cdiv(R, tr), pl.cdiv(L, tl))

    # VMEM limit from actual block bytes: double-buffered input + output
    # blocks plus the resident slope row, with margin; clipped to stay safely
    # under v7x's 64 MiB physical VMEM.
    block_bytes = tr * tl * itemsize
    slope_bytes = tl * jnp.dtype(slope_row.dtype).itemsize
    vmem_limit = 2 * (2 * block_bytes + slope_bytes) + (2 << 20)
    vmem_limit = int(min(max(vmem_limit, 8 << 20), 56 << 20))

    kernel = functools.partial(_sigmoid2d_kernel, beta=float(beta))

    out_flat = pl.pallas_call(
        kernel,
        out_shape=jax.ShapeDtypeStruct((R, L), x.dtype),
        grid_spec=pltpu.PrefetchScalarGridSpec(
            num_scalar_prefetch=0,
            grid=grid,
            in_specs=[
                pl.BlockSpec((tr, tl), lambda i, j: (i, j)),
                pl.BlockSpec((1, tl), lambda i, j: (0, j)),
            ],
            out_specs=pl.BlockSpec((tr, tl), lambda i, j: (i, j)),
        ),
        compiler_params=pltpu.CompilerParams(
            dimension_semantics=("parallel", "parallel"),
            vmem_limit_bytes=vmem_limit,
        ),
    )(x_flat, slope_row)

    return out_flat.reshape(N, C, H, W)


if __name__ == "__main__":
    key = jax.random.PRNGKey(0)

    # Module config: in_features must equal H of the NCHW input.
    N, C, H, W = 2, 4, 16, 16
    in_features = H
    beta = 1.0

    x = jax.random.normal(key, (N, C, H, W), dtype=jnp.float32)

    # 1) Parameter init matching torch.ones(in_features, 1).
    slope_ones = jnp.ones((in_features, 1), dtype=jnp.float32)
    out = jax.block_until_ready(sigmoid2d(x, slope_ones, beta=beta))
    ref = beta * jax.nn.sigmoid(slope_ones[None, None, :, :] * x)
    assert out.shape == (N, C, H, W)
    assert jnp.allclose(out, ref, atol=1e-6), "mismatch vs reference (ones slope)"

    # 2) Non-uniform slope to exercise the per-row broadcast path.
    slope_var = jnp.linspace(-2.0, 2.0, in_features, dtype=jnp.float32).reshape(
        in_features, 1)
    out2 = jax.block_until_ready(sigmoid2d(x, slope_var, beta=0.5))
    ref2 = 0.5 * jax.nn.sigmoid(slope_var[None, None, :, :] * x)
    assert jnp.allclose(out2, ref2, atol=1e-6), "mismatch vs reference (var slope)"

    # 3) bf16 input to exercise the dtype-aware (packed-sublane) tiling.
    x_bf16 = x.astype(jnp.bfloat16)
    out3 = jax.block_until_ready(sigmoid2d(x_bf16, slope_var, beta=beta))
    ref3 = (beta * jax.nn.sigmoid(
        slope_var[None, None, :, :] * x_bf16.astype(jnp.float32))
            ).astype(jnp.bfloat16)
    assert jnp.allclose(out3.astype(jnp.float32), ref3.astype(jnp.float32),
                        atol=1e-2), "mismatch vs reference (bf16)"

    print("KERNEL_OK")
</pallas_src>

<mosaic_0001>
module attributes {stable_mosaic.version = 11 : i64} {
  func.func @_sigmoid2d_kernel(%arg0: i32, %arg1: i32, %arg2: memref<8x256xf32, #tpu.memory_space<vmem>>, %arg3: memref<1x256xf32, #tpu.memory_space<vmem>>, %arg4: memref<8x256xf32, #tpu.memory_space<vmem>>) attributes {dimension_semantics = [#tpu.dimension_semantics<parallel>, #tpu.dimension_semantics<parallel>], iteration_bounds = array<i64: 1, 1>, scalar_prefetch = 0 : i64, scratch_operands = 0 : i64, tpu.core_type = #tpu.core_type<tc>, window_params = [{transform_indices = @transform_0, window_bounds = array<i64: 8, 256>}, {transform_indices = @transform_1, window_bounds = array<i64: 1, 256>}, {transform_indices = @transform_2, window_bounds = array<i64: 8, 256>}]} {
    %c0 = arith.constant 0 : index
    %c0_0 = arith.constant 0 : index
    %0 = vector.load %arg2[%c0, %c0_0] : memref<8x256xf32, #tpu.memory_space<vmem>>, vector<8x256xf32>
    %c0_1 = arith.constant 0 : index
    %c0_2 = arith.constant 0 : index
    %1 = vector.load %arg3[%c0_1, %c0_2] : memref<1x256xf32, #tpu.memory_space<vmem>>, vector<1x256xf32>
    %2 = vector.broadcast %1 : vector<1x256xf32> to vector<8x256xf32>
    %3 = arith.mulf %2, %0 : vector<8x256xf32>
    %4 = arith.negf %3 : vector<8x256xf32>
    %5 = math.exp %4 : vector<8x256xf32>
    %cst = arith.constant 1.000000e+00 : f32
    %6 = vector.broadcast %cst : f32 to vector<8x256xf32>
    %7 = arith.addf %6, %5 : vector<8x256xf32>
    %8 = arith.divf %6, %7 : vector<8x256xf32>
    %cst_3 = arith.constant 1.000000e+00 : f32
    %9 = vector.broadcast %cst_3 : f32 to vector<8x256xf32>
    %10 = arith.mulf %9, %8 : vector<8x256xf32>
    %c0_4 = arith.constant 0 : index
    %c0_5 = arith.constant 0 : index
    %11 = vector.load %arg4[%c0_4, %c0_5] : memref<8x256xf32, #tpu.memory_space<vmem>>, vector<8x256xf32>
    tpu.vector_store %arg4[%c0_4, %c0_5], %10 {strides = array<i32>} : memref<8x256xf32, #tpu.memory_space<vmem>>, vector<8x256xf32>,
    return
  }
  func.func @transform_0(%arg0: i32, %arg1: i32) -> (i32, i32) {
    %c0_i32 = arith.constant 0 : i32
    return %arg0, %arg1 : i32, i32
  }
  func.func @transform_1(%arg0: i32, %arg1: i32) -> (i32, i32) {
    %c0_i32 = arith.constant 0 : i32
    %c0_i32_0 = arith.constant 0 : i32
    return %c0_i32, %arg1 : i32, i32
  }
  func.func @transform_2(%arg0: i32, %arg1: i32) -> (i32, i32) {
    %c0_i32 = arith.constant 0 : i32
    return %arg0, %arg1 : i32, i32
  }
}

</mosaic_0001>

<llo_original>
// kernel: tpu_custom_call.1
$region0: #{tpu_custom_call.1}
  #allocation0 [shape = 'u32[]', space=smem, size = 0x4, offset = 0x4, fixed_abs, tag = 'smem constant byte address 0x4 - core index']
  #allocation1 [shape = 'u32[144,128]{1,0:T(1,128)}', space=vmem, size = 0x12000, scoped, tag = 'internal scratch']
  %s0 = inlined_call_operand.hbm [shape: f32[8,256], index: 0, kind: input, shape index: {}]
  %s1 = inlined_call_operand.vmem [shape: f32[1,256], index: 1, kind: input, shape index: {}]
  %s2 = inlined_call_operand.hbm [shape: f32[8,256], index: 2, kind: output, shape index: {}]
  %s3 = sld [smem:[#allocation0]]
  $region22: #{tpu_custom_call.1} parent=0
    _
  %s5 = ssub.s32 1, %s3
  %s6 = scalar_select 0, %s5, %s3
  $region1: #{tpu_custom_call.1} parent=0
    #allocation2 [shape = 'u8[8192]{0}', space=vmem, size = 0x2000, scoped, tag = 'input window, operand 0, single buffered']
    #allocation3 [shape = 's32[1]{0}', space=sflag, size = 0x4, scoped, tag = 'scoped memory for tpu_custom_call.1']
    #allocation4 [shape = 's32[1]{0}', space=sflag, size = 0x4, scoped, tag = 'scoped memory for tpu_custom_call.1']
    #allocation5 [shape = 'u8[8192]{0}', space=vmem, size = 0x2000, scoped, tag = 'output window, operand 0, single buffered']
    %7 = vsyncpa [#allocation3], 0
    %8 = vsyncpa [#allocation4], 0
    // Predicated region
    $region2: #{tpu_custom_call.1} parent=1 // pred_check
      _
    $region3: #{tpu_custom_call.1} parent=1 // pred_check_branch
      %10 = sbr.rel (0) target = $region5
    $region4: #{tpu_custom_call.1} parent=1 // pred_region
      %s12 = ssub.s32 256, 256
      %13 = vsyncadd [#allocation3], %s12
      %s15 = sshll.u32 [#allocation2], 4
      %s16 = int_to_ptr.vmem [resolvable:$true] %s15
      %18 = dma.hbm_to_vmem [thread:$0]  %s0, 256, %s16, [#allocation3]
    $region5: #{tpu_custom_call.1} parent=1 // pred_fallthru
      _
    // Predicated region
    $region6: #{tpu_custom_call.1} parent=1 // pred_check
      _
    $region7: #{tpu_custom_call.1} parent=1 // pred_check_branch
      %20 = sbr.rel (0) target = $region9
    $region8: #{tpu_custom_call.1} parent=1 // pred_region
      _
    $region9: #{tpu_custom_call.1} parent=1 // pred_fallthru
      _
    // Predicated region
    $region10: #{tpu_custom_call.1} parent=1 // pred_check
      _
    $region11: #{tpu_custom_call.1} parent=1 // pred_check_branch
      %22 = sbr.rel (0) target = $region13
    $region12: #{tpu_custom_call.1} parent=1 // pred_region
      %23 = dma.done [#allocation3], 256
    $region13: #{tpu_custom_call.1} parent=1 // pred_fallthru
      _
    %v24 = vld [vmem:[#allocation2] sm:$0xff]
    %v25 = vld [vmem:[#allocation2 + $0x8] sm:$0xff]
    %v26 = vld [vmem:[%s1] sm:$0x3]
    %v28 = vlaneseq
    %v29 = vshrl.u32 %v28, 7
    %v30 = vsub.s32 0, %v29
    %v31 = vrot.slane %v26, %v30
    %v32 = vlaneseq
    %v33 = vshrl.u32 %v32, 7
    %v34 = vsub.s32 1, %v33
    %v35 = vrot.slane %v26, %v34
    %v38 = vmul.f32 %v31, %v24
    %v39 = vmul.f32 %v35, %v25
    %v40 = vxor.u32 %v38, 2147483648
    %v41 = vxor.u32 %v39, 2147483648
    %v42 = vmul.f32 %v40, 1.442695
    %v43 = vpow.pop %v42
    %v44 = vmul.f32 %v41, 1.442695
    %v45 = vpow.pop %v44
    %v46 = vadd.f32 %v43, 1.0
    %v47 = vadd.f32 %v45, 1.0
    %v48 = vrcp.pop %v46
    %v49 = vmul.f32 1.0, %v48
    %v50 = vrcp.pop %v47
    %v51 = vmul.f32 1.0, %v50
    %52 = vst [vmem:[#allocation5] sm:$0xff] %v49
    %53 = vst [vmem:[#allocation5 + $0x8] sm:$0xff] %v51
    // Predicated region
    $region14: #{tpu_custom_call.1} parent=1 // pred_check
      _
    $region15: #{tpu_custom_call.1} parent=1 // pred_check_branch
      %55 = sbr.rel (0) target = $region17
    $region16: #{tpu_custom_call.1} parent=1 // pred_region
      %s57 = ssub.s32 256, 256
      %58 = vsyncadd [#allocation4], %s57
      %s60 = sshll.u32 [#allocation5], 4
      %s61 = int_to_ptr.vmem [resolvable:$true] %s60
      %63 = dma.vmem_to_hbm [thread:$0]  %s61, 256, %s2, [#allocation4]
    $region17: #{tpu_custom_call.1} parent=1 // pred_fallthru
      _
    // Predicated region
    $region18: #{tpu_custom_call.1} parent=1 // pred_check
      _
    $region19: #{tpu_custom_call.1} parent=1 // pred_check_branch
      %65 = sbr.rel (0) target = $region21
    $region20: #{tpu_custom_call.1} parent=1 // pred_region
      %66 = dma.done [#allocation4], 256
    $region21: #{tpu_custom_call.1} parent=1 // pred_fallthru
      _
    %67 = vsyncpa [#allocation3], 1
    %68 = vsyncpa [#allocation4], 1

</llo_original>
